<compile_context>
chip_gen: v7x
topology: tpu7x:2x2x1
jax: 0.10.0
libtpu: 0.0.40
codegen_flags: <defaults>
</compile_context>

<pallas_src>
import jax
import jax.numpy as jnp
from jax.experimental import pallas as pl
from jax.experimental.pallas import tpu as pltpu

_NEG = -1e30  # finite "-inf" used to mask padded softmax lanes


def _round_up(n, m):
    return ((n + m - 1) // m) * m


def _cdiv(a, b):
    return -(-a // b)


def moe_kernel(x_ref, w_ref, b_ref, ones_bd_ref, scat_ref, gwc_ref, out_ref, p_ref):
    x = x_ref[...]                                   # (TB, D), D == 2
    TB, D = x.shape
    CP = out_ref.shape[1]                            # padded class width (mult of 128)
    LP = p_ref.shape[1]                              # padded expert width (mult of 128)
    EC = ones_bd_ref.shape[0]                        # E * CP
    E = EC // CP                                     # number of experts

    # ---- one fused K=2 broadcast-FMA pass: all expert logits + gate x-part ----
    z = x[:, 0:1] * w_ref[0:1, :]                    # (TB, EC + LP)  VPU outer-product
    for d in range(1, D):
        z = z + x[:, d:d + 1] * w_ref[d:d + 1, :]
    z = z + b_ref[...]                               # pad lanes carry -1e30 bias

    elog = z[:, :EC]                                 # expert logits (TB, E*CP)
    gx = z[:, EC:]                                   # gate x-part   (TB, LP)

    # ---- shared per-row max across ALL experts (softmax is shift-invariant) ---
    # E-1 elementwise maxes (VPU) then a single 128-lane reduce (XLU).
    mlane = elog[:, 0:CP]
    for e in range(1, E):
        mlane = jnp.maximum(mlane, elog[:, e * CP:(e + 1) * CP])
    m = jnp.max(mlane, axis=-1, keepdims=True)       # (TB, 1)

    ex_all = jnp.exp(elog - m)                       # (TB, E*CP); pad lanes == exactly 0

    # ---- all E softmax denominators in ONE MXU matmul (block-diagonal ones) ---
    den = jnp.dot(ex_all, ones_bd_ref[...],
                  preferred_element_type=jnp.float32)            # (TB, LP)
    den = jnp.maximum(den, 1e-30)                    # pad lanes sum to 0: keep recip finite
    inv = pl.reciprocal(den, approx=True)            # EUP (free slot next to VPU work)

    # broadcast 1/den back across each expert's CP lanes via the MXU scatter mat
    inv_b = jnp.dot(inv, scat_ref[...],
                    preferred_element_type=jnp.float32)          # (TB, E*CP)
    y_all = ex_all * inv_b                           # per-expert softmax outputs

    # attention weights are identically 1 (softmax over a size-1 dim), so the
    # context vector is a plain sum over experts.
    context = y_all[:, 0:CP]
    for e in range(1, E):
        context = context + y_all[:, e * CP:(e + 1) * CP]

    # ---- gate: softmax(Linear(2+C, E)(cat(x, context))) ------------------------
    g = gx + jnp.dot(context, gwc_ref[...],
                     preferred_element_type=jnp.float32)         # (TB,CP)x(CP,LP) MXU
    gm = jnp.max(g, axis=-1, keepdims=True)
    ge = jnp.exp(g - gm)                             # pad lanes == 0
    gs = jnp.sum(ge, axis=-1, keepdims=True)
    p = ge * pl.reciprocal(gs, approx=True)          # (TB, LP); pad lanes == 0

    # ---- expectation over experts: out[b] = sum_e p[b,e] * y[b,e,:] ------------
    # p is lane-broadcast per expert block via the same MXU scatter matrix.
    p_b = jnp.dot(p, scat_ref[...],
                  preferred_element_type=jnp.float32)            # (TB, E*CP)
    wy = y_all * p_b
    out = wy[:, 0:CP]
    for e in range(1, E):
        out = out + wy[:, e * CP:(e + 1) * CP]

    # lane-dense, unmasked 128-wide stores
    out_ref[...] = out.astype(out_ref.dtype)
    p_ref[...] = p.astype(p_ref.dtype)


def pack_params(expert_w, expert_b, gate_w, gate_b):
    """Pack torch-layout params into lane-padded kernel operands (host side)."""
    E, D, C = expert_w.shape
    CP = _round_up(C, 128)
    LP = _round_up(E, 128)
    EC = E * CP

    # expert weights (E, D, C) -> (D, E*CP), gate x-part (D, E) -> (D, LP),
    # concatenated so ONE K=2 FMA pass produces both (slice is 128-aligned).
    ew = jnp.pad(expert_w, ((0, 0), (0, 0), (0, CP - C)))
    ew = jnp.transpose(ew, (1, 0, 2)).reshape(D, EC)
    gwx = jnp.pad(gate_w[:D], ((0, 0), (0, LP - E)))
    w = jnp.concatenate([ew, gwx], axis=1).astype(jnp.float32)   # (D, EC+LP)

    eb = jnp.pad(expert_b, ((0, 0), (0, CP - C)),
                 constant_values=_NEG).reshape(1, EC)
    gb = jnp.pad(gate_b.reshape(1, E), ((0, 0), (0, LP - E)),
                 constant_values=_NEG)
    b = jnp.concatenate([eb, gb], axis=1).astype(jnp.float32)    # (1, EC+LP)

    gwc = jnp.pad(gate_w[D:], ((0, CP - C), (0, LP - E))).astype(jnp.float32)  # (CP, LP)

    # block-diagonal ones (E*CP, LP): column e sums expert-e lanes on the MXU;
    # its transpose broadcasts a per-expert scalar back across that block.
    ones_bd = (jnp.arange(EC)[:, None] // CP
               == jnp.arange(LP)[None, :]).astype(jnp.float32)   # (EC, LP)
    scat = jnp.transpose(ones_bd)                                # (LP, EC)

    return {"w": w, "b": b, "ones_bd": ones_bd, "scat": scat, "gwc": gwc,
            "num_experts": E, "num_classes": C}


def moe_expectation_forward(x, packed, *, tile_b=1024, out_dtype=jnp.float32):
    B, D = x.shape
    E = packed["num_experts"]
    C = packed["num_classes"]
    CP = packed["gwc"].shape[0]
    LP = packed["gwc"].shape[1]
    EC = packed["ones_bd"].shape[0]

    # Adaptive batch tiling: tiles of up to `tile_b` rows (multiple of 8
    # sublanes) chosen to waste < 8 rows of padding; for B > tile_b this yields
    # >= 2 grid steps so the "parallel" axis can shard across v7x's two TCs.
    n_tiles = max(1, _cdiv(B, tile_b))
    tb = _round_up(_cdiv(B, n_tiles), 8)
    B_pad = n_tiles * tb
    xp = jnp.pad(x, ((0, B_pad - B), (0, 0))) if B_pad != B else x

    itemsize = jnp.dtype(out_dtype).itemsize
    mm_flops = 2 * (EC * LP + 2 * LP * EC + CP * LP)     # 4 small MXU matmuls / row
    vpu_flops = 2 * D * (EC + LP) + 8 * EC + 8 * LP
    flops = int(B_pad * (mm_flops + vpu_flops))
    transcendentals = int(B_pad * (EC + 2 * LP + 1))
    bytes_accessed = int(4 * (B_pad * D + (D + 1) * (EC + LP)
                              + 2 * EC * LP + CP * LP)
                         + itemsize * B_pad * (CP + LP))

    out_pad, p_pad = pl.pallas_call(
        moe_kernel,
        out_shape=(jax.ShapeDtypeStruct((B_pad, CP), out_dtype),
                   jax.ShapeDtypeStruct((B_pad, LP), out_dtype)),
        grid=(n_tiles,),
        in_specs=[
            pl.BlockSpec((tb, D), lambda i: (i, 0)),          # x (tiled rows)
            pl.BlockSpec((D, EC + LP), lambda i: (0, 0)),     # fused expert+gate-x W
            pl.BlockSpec((1, EC + LP), lambda i: (0, 0)),     # fused biases (pad=-1e30)
            pl.BlockSpec((EC, LP), lambda i: (0, 0)),         # block-diag ones (sum)
            pl.BlockSpec((LP, EC), lambda i: (0, 0)),         # scatter (broadcast)
            pl.BlockSpec((CP, LP), lambda i: (0, 0)),         # gate context weights
        ],
        out_specs=(pl.BlockSpec((tb, CP), lambda i: (i, 0)),
                   pl.BlockSpec((tb, LP), lambda i: (i, 0))),
        compiler_params=pltpu.CompilerParams(
            dimension_semantics=("parallel",),
            # headroom for tiles up to ~1-2K rows of f32 intermediates; stays
            # below v7x's 64 MiB physical VMEM.
            vmem_limit_bytes=48 * 1024 * 1024),
        cost_estimate=pl.CostEstimate(flops=flops,
                                      transcendentals=transcendentals,
                                      bytes_accessed=bytes_accessed),
    )(xp, packed["w"], packed["b"], packed["ones_bd"], packed["scat"],
      packed["gwc"])

    return (out_pad[:B, :C].astype(jnp.float32),
            p_pad[:B, :E].astype(jnp.float32))


def init_params(key, num_experts, num_classes, in_dim=2):
    ks = jax.random.split(key, 4)
    E, C, D = num_experts, num_classes, in_dim

    def u(k, shape, fan_in):
        bound = 1.0 / jnp.sqrt(fan_in)
        return jax.random.uniform(k, shape, jnp.float32, -bound, bound)

    return {
        # experts[e] = softmax(Linear(D, C)); weight stored transposed (D, C)
        "expert_w": u(ks[0], (E, D, C), D),
        "expert_b": u(ks[1], (E, C), D),
        # gate = softmax(Linear(D + C, E)); weight stored transposed (D+C, E)
        "gate_w": u(ks[2], (D + C, E), D + C),
        "gate_b": u(ks[3], (E,), D + C),
        # NOTE: attention params (Wx, We, weight) are output-invariant
        # (F.softmax over a size-1 dim == 1.0), so they are not materialized.
    }


if __name__ == "__main__":
    B, D, E, C = 8, 2, 4, 8
    key = jax.random.PRNGKey(0)
    k_x, k_p = jax.random.split(key)

    x = jax.random.normal(k_x, (B, D), jnp.float32)
    params = init_params(k_p, num_experts=E, num_classes=C, in_dim=D)
    packed = pack_params(params["expert_w"], params["expert_b"],
                         params["gate_w"], params["gate_b"])

    out, p = moe_expectation_forward(x, packed)
    out = jax.block_until_ready(out)
    p = jax.block_until_ready(p)

    assert out.shape == (B, C) and p.shape == (B, E)
    assert jnp.all(jnp.isfinite(out)) and jnp.all(jnp.isfinite(p))

    # approx-reciprocal (EUP) normalization -> tolerances relaxed from 1e-5
    TOL = 2e-2
    assert jnp.allclose(jnp.sum(p, axis=-1), 1.0, atol=TOL)
    # expectation of per-expert softmax outputs is itself a distribution
    assert jnp.allclose(jnp.sum(out, axis=-1), 1.0, atol=TOL)

    # pure-JAX reference (same math, unpadded) for numerical parity
    def ref_forward(xr, prm):
        y = jax.nn.softmax(
            jnp.einsum("bd,edc->bec", xr, prm["expert_w"]) + prm["expert_b"][None],
            axis=-1)                                          # (B, E, C)
        context = jnp.sum(y, axis=1)                          # attn weights == 1
        gate_in = jnp.concatenate([xr, context], axis=-1)     # (B, D + C)
        pr = jax.nn.softmax(gate_in @ prm["gate_w"] + prm["gate_b"], axis=-1)
        return jnp.sum(pr[:, :, None] * y, axis=1), pr

    out_expected, p_expected = ref_forward(x, params)
    assert jnp.allclose(out, out_expected, atol=TOL)
    assert jnp.allclose(p, p_expected, atol=TOL)
    print("KERNEL_OK")
</pallas_src>

<mosaic_0001>
module attributes {stable_mosaic.version = 11 : i64} {
  func.func @moe_kernel(%arg0: i32, %arg1: memref<8x2xf32, #tpu.memory_space<vmem>>, %arg2: memref<2x640xf32, #tpu.memory_space<vmem>>, %arg3: memref<1x640xf32, #tpu.memory_space<vmem>>, %arg4: memref<512x128xf32, #tpu.memory_space<vmem>>, %arg5: memref<128x512xf32, #tpu.memory_space<vmem>>, %arg6: memref<128x128xf32, #tpu.memory_space<vmem>>, %arg7: memref<8x128xf32, #tpu.memory_space<vmem>>, %arg8: memref<8x128xf32, #tpu.memory_space<vmem>>) attributes {dimension_semantics = [#tpu.dimension_semantics<parallel>], iteration_bounds = array<i64: 1>, scalar_prefetch = 0 : i64, scratch_operands = 0 : i64, tpu.core_type = #tpu.core_type<tc>, window_params = [{transform_indices = @transform_0, window_bounds = array<i64: 8, 2>}, {pipeline_mode = #tpu.pipeline_mode<synchronous>, transform_indices = @transform_1, window_bounds = array<i64: 2, 640>}, {pipeline_mode = #tpu.pipeline_mode<synchronous>, transform_indices = @transform_2, window_bounds = array<i64: 1, 640>}, {pipeline_mode = #tpu.pipeline_mode<synchronous>, transform_indices = @transform_3, window_bounds = array<i64: 512, 128>}, {pipeline_mode = #tpu.pipeline_mode<synchronous>, transform_indices = @transform_4, window_bounds = array<i64: 128, 512>}, {pipeline_mode = #tpu.pipeline_mode<synchronous>, transform_indices = @transform_5, window_bounds = array<i64: 128, 128>}, {transform_indices = @transform_6, window_bounds = array<i64: 8, 128>}, {transform_indices = @transform_7, window_bounds = array<i64: 8, 128>}]} {
    %c0 = arith.constant 0 : index
    %c0_0 = arith.constant 0 : index
    %0 = vector.load %arg1[%c0, %c0_0] : memref<8x2xf32, #tpu.memory_space<vmem>>, vector<8x2xf32>
    %1 = vector.extract_strided_slice %0 {offsets = [0, 0], sizes = [8, 1], strides = [1, 1]} : vector<8x2xf32> to vector<8x1xf32>
    %c0_1 = arith.constant 0 : index
    %c0_2 = arith.constant 0 : index
    %2 = vector.load %arg2[%c0_1, %c0_2] : memref<2x640xf32, #tpu.memory_space<vmem>>, vector<1x640xf32>
    %3 = vector.broadcast %1 : vector<8x1xf32> to vector<8x640xf32>
    %4 = vector.broadcast %2 : vector<1x640xf32> to vector<8x640xf32>
    %5 = arith.mulf %3, %4 : vector<8x640xf32>
    %6 = vector.extract_strided_slice %0 {offsets = [0, 1], sizes = [8, 1], strides = [1, 1]} : vector<8x2xf32> to vector<8x1xf32>
    %c1 = arith.constant 1 : index
    %c0_3 = arith.constant 0 : index
    %7 = vector.load %arg2[%c1, %c0_3] : memref<2x640xf32, #tpu.memory_space<vmem>>, vector<1x640xf32>
    %8 = vector.broadcast %6 : vector<8x1xf32> to vector<8x640xf32>
    %9 = vector.broadcast %7 : vector<1x640xf32> to vector<8x640xf32>
    %10 = arith.mulf %8, %9 : vector<8x640xf32>
    %11 = arith.addf %5, %10 : vector<8x640xf32>
    %c0_4 = arith.constant 0 : index
    %c0_5 = arith.constant 0 : index
    %12 = vector.load %arg3[%c0_4, %c0_5] : memref<1x640xf32, #tpu.memory_space<vmem>>, vector<1x640xf32>
    %13 = vector.broadcast %12 : vector<1x640xf32> to vector<8x640xf32>
    %14 = arith.addf %11, %13 : vector<8x640xf32>
    %15 = vector.extract_strided_slice %14 {offsets = [0, 0], sizes = [8, 512], strides = [1, 1]} : vector<8x640xf32> to vector<8x512xf32>
    %16 = vector.extract_strided_slice %14 {offsets = [0, 512], sizes = [8, 128], strides = [1, 1]} : vector<8x640xf32> to vector<8x128xf32>
    %17 = vector.extract_strided_slice %15 {offsets = [0, 0], sizes = [8, 128], strides = [1, 1]} : vector<8x512xf32> to vector<8x128xf32>
    %18 = vector.extract_strided_slice %15 {offsets = [0, 128], sizes = [8, 128], strides = [1, 1]} : vector<8x512xf32> to vector<8x128xf32>
    %19 = arith.maximumf %17, %18 : vector<8x128xf32>
    %20 = vector.extract_strided_slice %15 {offsets = [0, 256], sizes = [8, 128], strides = [1, 1]} : vector<8x512xf32> to vector<8x128xf32>
    %21 = arith.maximumf %19, %20 : vector<8x128xf32>
    %22 = vector.extract_strided_slice %15 {offsets = [0, 384], sizes = [8, 128], strides = [1, 1]} : vector<8x512xf32> to vector<8x128xf32>
    %23 = arith.maximumf %21, %22 : vector<8x128xf32>
    %cst = arith.constant dense<0xFF800000> : vector<8xf32>
    %24 = vector.multi_reduction <maximumf>, %23, %cst [1] : vector<8x128xf32> to vector<8xf32>
    %25 = vector.shape_cast %24 : vector<8xf32> to vector<8x1xf32>
    %26 = vector.broadcast %25 : vector<8x1xf32> to vector<8x512xf32>
    %27 = arith.subf %15, %26 : vector<8x512xf32>
    %28 = math.exp %27 : vector<8x512xf32>
    %c0_6 = arith.constant 0 : index
    %c0_7 = arith.constant 0 : index
    %29 = vector.load %arg4[%c0_6, %c0_7] : memref<512x128xf32, #tpu.memory_space<vmem>>, vector<512x128xf32>
    %cst_8 = arith.constant dense<0.000000e+00> : vector<8x128xf32>
    %30 = tpu.matmul %28, %29, %cst_8 {dimension_numbers = #tpu.dot_dimension_numbers<[1], [0], [0], [1], [0, 0, 1, 1], [], []>} : vector<8x512xf32>, vector<512x128xf32>, vector<8x128xf32> -> vector<8x128xf32>
    %cst_9 = arith.constant 1.000000e-30 : f32
    %31 = vector.broadcast %cst_9 : f32 to vector<8x128xf32>
    %32 = arith.maximumf %30, %31 : vector<8x128xf32>
    %33 = tpu.reciprocal %32 {approx = true} : vector<8x128xf32> -> vector<8x128xf32>
    %c0_10 = arith.constant 0 : index
    %c0_11 = arith.constant 0 : index
    %34 = vector.load %arg5[%c0_10, %c0_11] : memref<128x512xf32, #tpu.memory_space<vmem>>, vector<128x512xf32>
    %cst_12 = arith.constant dense<0.000000e+00> : vector<8x512xf32>
    %35 = tpu.matmul %33, %34, %cst_12 {dimension_numbers = #tpu.dot_dimension_numbers<[1], [0], [0], [1], [0, 0, 1, 1], [], []>} : vector<8x128xf32>, vector<128x512xf32>, vector<8x512xf32> -> vector<8x512xf32>
    %36 = arith.mulf %28, %35 : vector<8x512xf32>
    %37 = vector.extract_strided_slice %36 {offsets = [0, 0], sizes = [8, 128], strides = [1, 1]} : vector<8x512xf32> to vector<8x128xf32>
    %38 = vector.extract_strided_slice %36 {offsets = [0, 128], sizes = [8, 128], strides = [1, 1]} : vector<8x512xf32> to vector<8x128xf32>
    %39 = arith.addf %37, %38 : vector<8x128xf32>
    %40 = vector.extract_strided_slice %36 {offsets = [0, 256], sizes = [8, 128], strides = [1, 1]} : vector<8x512xf32> to vector<8x128xf32>
    %41 = arith.addf %39, %40 : vector<8x128xf32>
    %42 = vector.extract_strided_slice %36 {offsets = [0, 384], sizes = [8, 128], strides = [1, 1]} : vector<8x512xf32> to vector<8x128xf32>
    %43 = arith.addf %41, %42 : vector<8x128xf32>
    %c0_13 = arith.constant 0 : index
    %c0_14 = arith.constant 0 : index
    %44 = vector.load %arg6[%c0_13, %c0_14] : memref<128x128xf32, #tpu.memory_space<vmem>>, vector<128x128xf32>
    %cst_15 = arith.constant dense<0.000000e+00> : vector<8x128xf32>
    %45 = tpu.matmul %43, %44, %cst_15 {dimension_numbers = #tpu.dot_dimension_numbers<[1], [0], [0], [1], [0, 0, 1, 1], [], []>} : vector<8x128xf32>, vector<128x128xf32>, vector<8x128xf32> -> vector<8x128xf32>
    %46 = arith.addf %16, %45 : vector<8x128xf32>
    %cst_16 = arith.constant dense<0xFF800000> : vector<8xf32>
    %47 = vector.multi_reduction <maximumf>, %46, %cst_16 [1] : vector<8x128xf32> to vector<8xf32>
    %48 = vector.shape_cast %47 : vector<8xf32> to vector<8x1xf32>
    %49 = vector.broadcast %48 : vector<8x1xf32> to vector<8x128xf32>
    %50 = arith.subf %46, %49 : vector<8x128xf32>
    %51 = math.exp %50 : vector<8x128xf32>
    %cst_17 = arith.constant dense<0.000000e+00> : vector<8xf32>
    %52 = vector.multi_reduction <add>, %51, %cst_17 [1] : vector<8x128xf32> to vector<8xf32>
    %53 = vector.shape_cast %52 : vector<8xf32> to vector<8x1xf32>
    %54 = tpu.reciprocal %53 {approx = true} : vector<8x1xf32> -> vector<8x1xf32>
    %55 = vector.broadcast %54 : vector<8x1xf32> to vector<8x128xf32>
    %56 = arith.mulf %51, %55 : vector<8x128xf32>
    %c0_18 = arith.constant 0 : index
    %c0_19 = arith.constant 0 : index
    %57 = vector.load %arg5[%c0_18, %c0_19] : memref<128x512xf32, #tpu.memory_space<vmem>>, vector<128x512xf32>
    %cst_20 = arith.constant dense<0.000000e+00> : vector<8x512xf32>
    %58 = tpu.matmul %56, %57, %cst_20 {dimension_numbers = #tpu.dot_dimension_numbers<[1], [0], [0], [1], [0, 0, 1, 1], [], []>} : vector<8x128xf32>, vector<128x512xf32>, vector<8x512xf32> -> vector<8x512xf32>
    %59 = arith.mulf %36, %58 : vector<8x512xf32>
    %60 = vector.extract_strided_slice %59 {offsets = [0, 0], sizes = [8, 128], strides = [1, 1]} : vector<8x512xf32> to vector<8x128xf32>
    %61 = vector.extract_strided_slice %59 {offsets = [0, 128], sizes = [8, 128], strides = [1, 1]} : vector<8x512xf32> to vector<8x128xf32>
    %62 = arith.addf %60, %61 : vector<8x128xf32>
    %63 = vector.extract_strided_slice %59 {offsets = [0, 256], sizes = [8, 128], strides = [1, 1]} : vector<8x512xf32> to vector<8x128xf32>
    %64 = arith.addf %62, %63 : vector<8x128xf32>
    %65 = vector.extract_strided_slice %59 {offsets = [0, 384], sizes = [8, 128], strides = [1, 1]} : vector<8x512xf32> to vector<8x128xf32>
    %66 = arith.addf %64, %65 : vector<8x128xf32>
    %c0_21 = arith.constant 0 : index
    %c0_22 = arith.constant 0 : index
    %67 = vector.load %arg7[%c0_21, %c0_22] : memref<8x128xf32, #tpu.memory_space<vmem>>, vector<8x128xf32>
    tpu.vector_store %arg7[%c0_21, %c0_22], %66 {strides = array<i32>} : memref<8x128xf32, #tpu.memory_space<vmem>>, vector<8x128xf32>,
    %c0_23 = arith.constant 0 : index
    %c0_24 = arith.constant 0 : index
    %68 = vector.load %arg8[%c0_23, %c0_24] : memref<8x128xf32, #tpu.memory_space<vmem>>, vector<8x128xf32>
    tpu.vector_store %arg8[%c0_23, %c0_24], %56 {strides = array<i32>} : memref<8x128xf32, #tpu.memory_space<vmem>>, vector<8x128xf32>,
    return
  }
  func.func @transform_0(%arg0: i32) -> (i32, i32) {
    %c0_i32 = arith.constant 0 : i32
    %c0_i32_0 = arith.constant 0 : i32
    return %arg0, %c0_i32 : i32, i32
  }
  func.func @transform_1(%arg0: i32) -> (i32, i32) {
    %c0_i32 = arith.constant 0 : i32
    %c0_i32_0 = arith.constant 0 : i32
    %c0_i32_1 = arith.constant 0 : i32
    return %c0_i32, %c0_i32_0 : i32, i32
  }
  func.func @transform_2(%arg0: i32) -> (i32, i32) {
    %c0_i32 = arith.constant 0 : i32
    %c0_i32_0 = arith.constant 0 : i32
    %c0_i32_1 = arith.constant 0 : i32
    return %c0_i32, %c0_i32_0 : i32, i32
  }
  func.func @transform_3(%arg0: i32) -> (i32, i32) {
    %c0_i32 = arith.constant 0 : i32
    %c0_i32_0 = arith.constant 0 : i32
    %c0_i32_1 = arith.constant 0 : i32
    return %c0_i32, %c0_i32_0 : i32, i32
  }
  func.func @transform_4(%arg0: i32) -> (i32, i32) {
    %c0_i32 = arith.constant 0 : i32
    %c0_i32_0 = arith.constant 0 : i32
    %c0_i32_1 = arith.constant 0 : i32
    return %c0_i32, %c0_i32_0 : i32, i32
  }
  func.func @transform_5(%arg0: i32) -> (i32, i32) {
    %c0_i32 = arith.constant 0 : i32
    %c0_i32_0 = arith.constant 0 : i32
    %c0_i32_1 = arith.constant 0 : i32
    return %c0_i32, %c0_i32_0 : i32, i32
  }
  func.func @transform_6(%arg0: i32) -> (i32, i32) {
    %c0_i32 = arith.constant 0 : i32
    %c0_i32_0 = arith.constant 0 : i32
    return %arg0, %c0_i32 : i32, i32
  }
  func.func @transform_7(%arg0: i32) -> (i32, i32) {
    %c0_i32 = arith.constant 0 : i32
    %c0_i32_0 = arith.constant 0 : i32
    return %arg0, %c0_i32 : i32, i32
  }
}

</mosaic_0001>

<llo_original>
// kernel: tpu_custom_call.1
$region0: #{tpu_custom_call.1}
  #allocation0 [shape = 'u32[]', space=smem, size = 0x4, offset = 0x4, fixed_abs, tag = 'smem constant byte address 0x4 - core index']
  #allocation1 [shape = 'u32[144,128]{1,0:T(1,128)}', space=vmem, size = 0x12000, scoped, tag = 'internal scratch']
  %s0 = inlined_call_operand.vmem [shape: f32[8,2], index: 0, kind: input, shape index: {}]
  %s1 = inlined_call_operand.vmem [shape: f32[2,640], index: 1, kind: input, shape index: {}]
  %s2 = inlined_call_operand.vmem [shape: f32[1,640], index: 2, kind: input, shape index: {}]
  %s3 = inlined_call_operand.hbm [shape: f32[512,128], index: 3, kind: input, shape index: {}]
  %s4 = inlined_call_operand.hbm [shape: f32[128,512], index: 4, kind: input, shape index: {}]
  %s5 = inlined_call_operand.hbm [shape: f32[128,128], index: 5, kind: input, shape index: {}]
  %s6 = inlined_call_operand.hbm [shape: f32[8,128], index: 6, kind: output, shape index: {0}]
  %s7 = inlined_call_operand.hbm [shape: f32[8,128], index: 7, kind: output, shape index: {1}]
  %8 = xla_tuple %s6, %s7
  %s9 = sld [smem:[#allocation0]]
  $region54: #{tpu_custom_call.1} parent=0
    _
  %s11 = ssub.s32 1, %s9
  %s12 = scalar_select 0, %s11, %s9
  $region1: #{tpu_custom_call.1} parent=0
    #allocation2 [shape = 'u8[262144]{0}', space=vmem, size = 0x40000, scoped, tag = 'input window, operand 3, single buffered']
    #allocation3 [shape = 's32[1]{0}', space=sflag, size = 0x4, scoped, tag = 'scoped memory for tpu_custom_call.1']
    #allocation4 [shape = 's32[1]{0}', space=sflag, size = 0x4, scoped, tag = 'scoped memory for tpu_custom_call.1']
    #allocation5 [shape = 'u8[262144]{0}', space=vmem, size = 0x40000, scoped, tag = 'input window, operand 4, single buffered']
    #allocation6 [shape = 's32[1]{0}', space=sflag, size = 0x4, scoped, tag = 'scoped memory for tpu_custom_call.1']
    #allocation7 [shape = 'u8[65536]{0}', space=vmem, size = 0x10000, scoped, tag = 'input window, operand 5, single buffered']
    #allocation8 [shape = 'u8[4096]{0}', space=vmem, size = 0x1000, scoped, tag = 'output window, operand 0, single buffered']
    #allocation9 [shape = 'u8[4096]{0}', space=vmem, size = 0x1000, scoped, tag = 'output window, operand 1, single buffered']
    #allocation10 [shape = 's32[1]{0}', space=sflag, size = 0x4, scoped, tag = 'scoped memory for tpu_custom_call.1']
    %13 = vsyncpa [#allocation3], 0
    %14 = vsyncpa [#allocation6], 0
    %15 = vsyncpa [#allocation4], 0
    %16 = vsyncpa [#allocation10], 0
    // Predicated region
    $region2: #{tpu_custom_call.1} parent=1 // pred_check
      _
    $region3: #{tpu_custom_call.1} parent=1 // pred_check_branch
      %18 = sbr.rel (0) target = $region5
    $region4: #{tpu_custom_call.1} parent=1 // pred_region
      _
    $region5: #{tpu_custom_call.1} parent=1 // pred_fallthru
      _
    // Predicated region
    $region6: #{tpu_custom_call.1} parent=1 // pred_check
      _
    $region7: #{tpu_custom_call.1} parent=1 // pred_check_branch
      %20 = sbr.rel (0) target = $region9
    $region8: #{tpu_custom_call.1} parent=1 // pred_region
      _
    $region9: #{tpu_custom_call.1} parent=1 // pred_fallthru
      _
    // Predicated region
    $region10: #{tpu_custom_call.1} parent=1 // pred_check
      _
    $region11: #{tpu_custom_call.1} parent=1 // pred_check_branch
      %22 = sbr.rel (0) target = $region13
    $region12: #{tpu_custom_call.1} parent=1 // pred_region
      _
    $region13: #{tpu_custom_call.1} parent=1 // pred_fallthru
      _
    // Predicated region
    $region14: #{tpu_custom_call.1} parent=1 // pred_check
      _
    $region15: #{tpu_custom_call.1} parent=1 // pred_check_branch
      %24 = sbr.rel (0) target = $region17
    $region16: #{tpu_custom_call.1} parent=1 // pred_region
      %s26 = ssub.s32 8192, 8192
      %27 = vsyncadd [#allocation3], %s26
      %s28 = sshll.u32 [#allocation2], 4
      %s29 = int_to_ptr.vmem [resolvable:$true] %s28
      %34 = dma.hbm_to_vmem [thread:$0]  %s3, 8192, %s29, [#allocation3], 128, 128, 8
    $region17: #{tpu_custom_call.1} parent=1 // pred_fallthru
      _
    // Predicated region
    $region18: #{tpu_custom_call.1} parent=1 // pred_check
      _
    $region19: #{tpu_custom_call.1} parent=1 // pred_check_branch
      %36 = sbr.rel (0) target = $region21
    $region20: #{tpu_custom_call.1} parent=1 // pred_region
      %s38 = ssub.s32 8192, 8192
      %39 = vsyncadd [#allocation6], %s38
      %s40 = sshll.u32 [#allocation5], 4
      %s41 = int_to_ptr.vmem [resolvable:$true] %s40
      %46 = dma.hbm_to_vmem [thread:$0]  %s4, 8192, %s41, [#allocation6], 512, 512, 32
    $region21: #{tpu_custom_call.1} parent=1 // pred_fallthru
      _
    // Predicated region
    $region22: #{tpu_custom_call.1} parent=1 // pred_check
      _
    $region23: #{tpu_custom_call.1} parent=1 // pred_check_branch
      %48 = sbr.rel (0) target = $region25
    $region24: #{tpu_custom_call.1} parent=1 // pred_region
      %s50 = ssub.s32 2048, 2048
      %51 = vsyncadd [#allocation6], %s50
      %s52 = sshll.u32 [#allocation7], 4
      %s53 = int_to_ptr.vmem [resolvable:$true] %s52
      %58 = dma.hbm_to_vmem [thread:$0]  %s5, 2048, %s53, [#allocation6], 128, 128, 8
    $region25: #{tpu_custom_call.1} parent=1 // pred_fallthru
      _
    // Predicated region
    $region26: #{tpu_custom_call.1} parent=1 // pred_check
      _
    $region27: #{tpu_custom_call.1} parent=1 // pred_check_branch
      %60 = sbr.rel (0) target = $region29
    $region28: #{tpu_custom_call.1} parent=1 // pred_region
      %61 = dma.done [#allocation3], 8192
    $region29: #{tpu_custom_call.1} parent=1 // pred_fallthru
      _
    // Predicated region
    $region30: #{tpu_custom_call.1} parent=1 // pred_check
      _
    $region31: #{tpu_custom_call.1} parent=1 // pred_check_branch
      %63 = sbr.rel (0) target = $region33
    $region32: #{tpu_custom_call.1} parent=1 // pred_region
      %64 = dma.done [#allocation6], 8192
    $region33: #{tpu_custom_call.1} parent=1 // pred_fallthru
      _
    // Predicated region
    $region34: #{tpu_custom_call.1} parent=1 // pred_check
      _
    $region35: #{tpu_custom_call.1} parent=1 // pred_check_branch
      %66 = sbr.rel (0) target = $region37
    $region36: #{tpu_custom_call.1} parent=1 // pred_region
      %67 = dma.done [#allocation6], 2048
    $region37: #{tpu_custom_call.1} parent=1 // pred_fallthru
      _
    %v68 = vld [vmem:[%s0] sm:$0xff]
    %v69 = vld [vmem:[%s1] ss:$2 sm:$0x1f]
    %71 = vset.pattern.permute.xlu0 0
    %72 = vperm.xlu0 %71, %v68
    %v73 = vpop.permute.xlu0 %72
    %v76 = vlaneseq
    %v77 = vshrl.u32 %v76, 7
    %v78 = vsub.s32 0, %v77
    %v79 = vrot.slane %v69, %v78
    %v80 = vlaneseq
    %v81 = vshrl.u32 %v80, 7
    %v82 = vsub.s32 1, %v81
    %v83 = vrot.slane %v69, %v82
    %v84 = vlaneseq
    %v85 = vshrl.u32 %v84, 7
    %v86 = vsub.s32 2, %v85
    %v87 = vrot.slane %v69, %v86
    %v88 = vlaneseq
    %v89 = vshrl.u32 %v88, 7
    %v90 = vsub.s32 3, %v89
    %v91 = vrot.slane %v69, %v90
    %v92 = vlaneseq
    %v93 = vshrl.u32 %v92, 7
    %v94 = vsub.s32 4, %v93
    %v95 = vrot.slane %v69, %v94
    %v101 = vmul.f32 %v73, %v79
    %v102 = vmul.f32 %v73, %v83
    %v103 = vmul.f32 %v73, %v87
    %v104 = vmul.f32 %v73, %v91
    %v105 = vmul.f32 %v73, %v95
    %s106 = scalar_lea.vmem %s1, 1
    %v107 = vld [vmem:[%s106] ss:$2 sm:$0x1f]
    %108 = vset.pattern.permute.xlu0 1
    %109 = vperm.xlu0 %108, %v68
    %v110 = vpop.permute.xlu0 %109
    %v113 = vlaneseq
    %v114 = vshrl.u32 %v113, 7
    %v115 = vsub.s32 0, %v114
    %v116 = vrot.slane %v107, %v115
    %v117 = vlaneseq
    %v118 = vshrl.u32 %v117, 7
    %v119 = vsub.s32 1, %v118
    %v120 = vrot.slane %v107, %v119
    %v121 = vlaneseq
    %v122 = vshrl.u32 %v121, 7
    %v123 = vsub.s32 2, %v122
    %v124 = vrot.slane %v107, %v123
    %v125 = vlaneseq
    %v126 = vshrl.u32 %v125, 7
    %v127 = vsub.s32 3, %v126
    %v128 = vrot.slane %v107, %v127
    %v129 = vlaneseq
    %v130 = vshrl.u32 %v129, 7
    %v131 = vsub.s32 4, %v130
    %v132 = vrot.slane %v107, %v131
    %v138 = vmul.f32 %v110, %v116
    %v139 = vmul.f32 %v110, %v120
    %v140 = vmul.f32 %v110, %v124
    %v141 = vmul.f32 %v110, %v128
    %v142 = vmul.f32 %v110, %v132
    %v143 = vadd.f32 %v101, %v138
    %v144 = vadd.f32 %v102, %v139
    %v145 = vadd.f32 %v103, %v140
    %v146 = vadd.f32 %v104, %v141
    %v147 = vadd.f32 %v105, %v142
    %v148 = vld [vmem:[%s2] sm:$0x1f]
    %v150 = vlaneseq
    %v151 = vshrl.u32 %v150, 7
    %v152 = vsub.s32 0, %v151
    %v153 = vrot.slane %v148, %v152
    %v154 = vlaneseq
    %v155 = vshrl.u32 %v154, 7
    %v156 = vsub.s32 1, %v155
    %v157 = vrot.slane %v148, %v156
    %v158 = vlaneseq
    %v159 = vshrl.u32 %v158, 7
    %v160 = vsub.s32 2, %v159
    %v161 = vrot.slane %v148, %v160
    %v162 = vlaneseq
    %v163 = vshrl.u32 %v162, 7
    %v164 = vsub.s32 3, %v163
    %v165 = vrot.slane %v148, %v164
    %v166 = vlaneseq
    %v167 = vshrl.u32 %v166, 7
    %v168 = vsub.s32 4, %v167
    %v169 = vrot.slane %v148, %v168
    %v175 = vadd.f32 %v143, %v153
    %v176 = vadd.f32 %v144, %v157
    %v177 = vadd.f32 %v145, %v161
    %v178 = vadd.f32 %v146, %v165
    %v179 = vadd.f32 %v147, %v169
    %v180 = vmax.f32 %v175, %v176
    %v181 = vmax.f32 %v180, %v177
    %v182 = vmax.f32 %v181, %v178
    %183 = vmax.xlane.f32.xlu0 %v182
    %v184 = vpop.xlane.xlu0 %183
    %v185 = vsub.f32 %v175, %v184
    %v186 = vsub.f32 %v176, %v184
    %v187 = vsub.f32 %v177, %v184
    %v188 = vsub.f32 %v178, %v184
    %v189 = vmul.f32 %v185, 1.442695
    %v190 = vpow.pop %v189
    %v191 = vmul.f32 %v186, 1.442695
    %v192 = vpow.pop %v191
    %v193 = vmul.f32 %v187, 1.442695
    %v194 = vpow.pop %v193
    %v195 = vmul.f32 %v188, 1.442695
    %v196 = vpow.pop %v195
    %v197 = vld [vmem:[#allocation2] sm:$0xff]
    %v198 = vld [vmem:[#allocation2 + $0x8] sm:$0xff]
    %v199 = vld [vmem:[#allocation2 + $0x10] sm:$0xff]
    %v200 = vld [vmem:[#allocation2 + $0x18] sm:$0xff]
    %v201 = vld [vmem:[#allocation2 + $0x20] sm:$0xff]
    %v202 = vld [vmem:[#allocation2 + $0x28] sm:$0xff]
    %v203 = vld [vmem:[#allocation2 + $0x30] sm:$0xff]
    %v204 = vld [vmem:[#allocation2 + $0x38] sm:$0xff]
    %v205 = vld [vmem:[#allocation2 + $0x40] sm:$0xff]
    %v206 = vld [vmem:[#allocation2 + $0x48] sm:$0xff]
    %v207 = vld [vmem:[#allocation2 + $0x50] sm:$0xff]
    %v208 = vld [vmem:[#allocation2 + $0x58] sm:$0xff]
    %v209 = vld [vmem:[#allocation2 + $0x60] sm:$0xff]
    %v210 = vld [vmem:[#allocation2 + $0x68] sm:$0xff]
    %v211 = vld [vmem:[#allocation2 + $0x70] sm:$0xff]
    %v212 = vld [vmem:[#allocation2 + $0x78] sm:$0xff]
    %v213 = vld [vmem:[#allocation2 + $0x80] sm:$0xff]
    %v214 = vld [vmem:[#allocation2 + $0x88] sm:$0xff]
    %v215 = vld [vmem:[#allocation2 + $0x90] sm:$0xff]
    %v216 = vld [vmem:[#allocation2 + $0x98] sm:$0xff]
    %v217 = vld [vmem:[#allocation2 + $0xa0] sm:$0xff]
    %v218 = vld [vmem:[#allocation2 + $0xa8] sm:$0xff]
    %v219 = vld [vmem:[#allocation2 + $0xb0] sm:$0xff]
    %v220 = vld [vmem:[#allocation2 + $0xb8] sm:$0xff]
    %v221 = vld [vmem:[#allocation2 + $0xc0] sm:$0xff]
    %v222 = vld [vmem:[#allocation2 + $0xc8] sm:$0xff]
    %v223 = vld [vmem:[#allocation2 + $0xd0] sm:$0xff]
    %v224 = vld [vmem:[#allocation2 + $0xd8] sm:$0xff]
    %v225 = vld [vmem:[#allocation2 + $0xe0] sm:$0xff]
    %v226 = vld [vmem:[#allocation2 + $0xe8] sm:$0xff]
    %v227 = vld [vmem:[#allocation2 + $0xf0] sm:$0xff]
    %v228 = vld [vmem:[#allocation2 + $0xf8] sm:$0xff]
    %v229 = vld [vmem:[#allocation2 + $0x100] sm:$0xff]
    %v230 = vld [vmem:[#allocation2 + $0x108] sm:$0xff]
    %v231 = vld [vmem:[#allocation2 + $0x110] sm:$0xff]
    %v232 = vld [vmem:[#allocation2 + $0x118] sm:$0xff]
    %v233 = vld [vmem:[#allocation2 + $0x120] sm:$0xff]
    %v234 = vld [vmem:[#allocation2 + $0x128] sm:$0xff]
    %v235 = vld [vmem:[#allocation2 + $0x130] sm:$0xff]
    %v236 = vld [vmem:[#allocation2 + $0x138] sm:$0xff]
    %v237 = vld [vmem:[#allocation2 + $0x140] sm:$0xff]
    %v238 = vld [vmem:[#allocation2 + $0x148] sm:$0xff]
    %v239 = vld [vmem:[#allocation2 + $0x150] sm:$0xff]
    %v240 = vld [vmem:[#allocation2 + $0x158] sm:$0xff]
    %v241 = vld [vmem:[#allocation2 + $0x160] sm:$0xff]
    %v242 = vld [vmem:[#allocation2 + $0x168] sm:$0xff]
    %v243 = vld [vmem:[#allocation2 + $0x170] sm:$0xff]
    %v244 = vld [vmem:[#allocation2 + $0x178] sm:$0xff]
    %v245 = vld [vmem:[#allocation2 + $0x180] sm:$0xff]
    %v246 = vld [vmem:[#allocation2 + $0x188] sm:$0xff]
    %v247 = vld [vmem:[#allocation2 + $0x190] sm:$0xff]
    %v248 = vld [vmem:[#allocation2 + $0x198] sm:$0xff]
    %v249 = vld [vmem:[#allocation2 + $0x1a0] sm:$0xff]
    %v250 = vld [vmem:[#allocation2 + $0x1a8] sm:$0xff]
    %v251 = vld [vmem:[#allocation2 + $0x1b0] sm:$0xff]
    %v252 = vld [vmem:[#allocation2 + $0x1b8] sm:$0xff]
    %v253 = vld [vmem:[#allocation2 + $0x1c0] sm:$0xff]
    %v254 = vld [vmem:[#allocation2 + $0x1c8] sm:$0xff]
    %v255 = vld [vmem:[#allocation2 + $0x1d0] sm:$0xff]
    %v256 = vld [vmem:[#allocation2 + $0x1d8] sm:$0xff]
    %v257 = vld [vmem:[#allocation2 + $0x1e0] sm:$0xff]
    %v258 = vld [vmem:[#allocation2 + $0x1e8] sm:$0xff]
    %v259 = vld [vmem:[#allocation2 + $0x1f0] sm:$0xff]
    %v260 = vld [vmem:[#allocation2 + $0x1f8] sm:$0xff]
    %261 = vmatprep.subr.mxu0 0.0
    %262 = vmatpush1.msra.mxu0 %v197
    %263 = vmatprep.subr.mxu0 0.0
    %264 = vmatpush1.msra.mxu0 %v198
    %265 = vmatprep.subr.mxu0 0.0
    %266 = vmatpush1.msra.mxu0 %v199
    %267 = vmatprep.subr.mxu0 0.0
    %268 = vmatpush1.msra.mxu0 %v200
    %269 = vmatprep.subr.mxu0 0.0
    %270 = vmatpush1.msra.mxu0 %v201
    %271 = vmatprep.subr.mxu0 0.0
    %272 = vmatpush1.msra.mxu0 %v202
    %273 = vmatprep.subr.mxu0 0.0
    %274 = vmatpush1.msra.mxu0 %v203
    %275 = vmatprep.subr.mxu0 0.0
    %276 = vmatpush1.msra.mxu0 %v204
    %277 = vmatprep.subr.mxu0 0.0
    %278 = vmatpush1.msra.mxu0 %v205
    %279 = vmatprep.subr.mxu0 0.0
    %280 = vmatpush1.msra.mxu0 %v206
    %281 = vmatprep.subr.mxu0 0.0
    %282 = vmatpush1.msra.mxu0 %v207
    %283 = vmatprep.subr.mxu0 0.0
    %284 = vmatpush1.msra.mxu0 %v208
    %285 = vmatprep.subr.mxu0 0.0
    %286 = vmatpush1.msra.mxu0 %v209
    %287 = vmatprep.subr.mxu0 0.0
    %288 = vmatpush1.msra.mxu0 %v210
    %289 = vmatprep.subr.mxu0 0.0
    %290 = vmatpush1.msra.mxu0 %v211
    %291 = vmatprep.subr.mxu0 0.0
    %292 = vmatpush1.msra.mxu0 %v212
    %293 = vmatprep.subr.mxu0 0.0
    %294 = vmatpush1.msra.mxu0 %v213
    %295 = vmatprep.subr.mxu0 0.0
    %296 = vmatpush1.msra.mxu0 %v214
    %297 = vmatprep.subr.mxu0 0.0
    %298 = vmatpush1.msra.mxu0 %v215
    %299 = vmatprep.subr.mxu0 0.0
    %300 = vmatpush1.msra.mxu0 %v216
    %301 = vmatprep.subr.mxu0 0.0
    %302 = vmatpush1.msra.mxu0 %v217
    %303 = vmatprep.subr.mxu0 0.0
    %304 = vmatpush1.msra.mxu0 %v218
    %305 = vmatprep.subr.mxu0 0.0
    %306 = vmatpush1.msra.mxu0 %v219
    %307 = vmatprep.subr.mxu0 0.0
    %308 = vmatpush1.msra.mxu0 %v220
    %309 = vmatprep.subr.mxu0 0.0
    %310 = vmatpush1.msra.mxu0 %v221
    %311 = vmatprep.subr.mxu0 0.0
    %312 = vmatpush1.msra.mxu0 %v222
    %313 = vmatprep.subr.mxu0 0.0
    %314 = vmatpush1.msra.mxu0 %v223
    %315 = vmatprep.subr.mxu0 0.0
    %316 = vmatpush1.msra.mxu0 %v224
    %317 = vmatprep.subr.mxu0 0.0
    %318 = vmatpush1.msra.mxu0 %v225
    %319 = vmatprep.subr.mxu0 0.0
    %320 = vmatpush1.msra.mxu0 %v226
    %321 = vmatprep.subr.mxu0 0.0
    %322 = vmatpush1.msra.mxu0 %v227
    %323 = vmatprep.subr.mxu0 0.0
    %324 = vmatpush1.msra.mxu0 %v228
    %325 = vmatprep.mubr.f32.mxu0 %v192
    %326 = vmatmul.mubr.f32.gmra.mrb[0].mxu0 %v190
    %v327 = vpop.f32.mrb[0].mxu0
    %v328 = vadd.f32 0.0, %v327
    %v329 = vpop.f32.mrb[0].mxu0
    %330 = vdwg.mxu0
    %331 = vmatprep.subr.mxu0 0.0
    %332 = vmatpush1.msra.mxu0 %v229
    %333 = vmatprep.subr.mxu0 0.0
    %334 = vmatpush1.msra.mxu0 %v230
    %335 = vmatprep.subr.mxu0 0.0
    %336 = vmatpush1.msra.mxu0 %v231
    %337 = vmatprep.subr.mxu0 0.0
    %338 = vmatpush1.msra.mxu0 %v232
    %339 = vmatprep.subr.mxu0 0.0
    %340 = vmatpush1.msra.mxu0 %v233
    %341 = vmatprep.subr.mxu0 0.0
    %342 = vmatpush1.msra.mxu0 %v234
    %343 = vmatprep.subr.mxu0 0.0
    %344 = vmatpush1.msra.mxu0 %v235
    %345 = vmatprep.subr.mxu0 0.0
    %346 = vmatpush1.msra.mxu0 %v236
    %347 = vmatprep.subr.mxu0 0.0
    %348 = vmatpush1.msra.mxu0 %v237
    %349 = vmatprep.subr.mxu0 0.0
    %350 = vmatpush1.msra.mxu0 %v238
    %351 = vmatprep.subr.mxu0 0.0
    %352 = vmatpush1.msra.mxu0 %v239
    %353 = vmatprep.subr.mxu0 0.0
    %354 = vmatpush1.msra.mxu0 %v240
    %355 = vmatprep.subr.mxu0 0.0
    %356 = vmatpush1.msra.mxu0 %v241
    %357 = vmatprep.subr.mxu0 0.0
    %358 = vmatpush1.msra.mxu0 %v242
    %359 = vmatprep.subr.mxu0 0.0
    %360 = vmatpush1.msra.mxu0 %v243
    %361 = vmatprep.subr.mxu0 0.0
    %362 = vmatpush1.msra.mxu0 %v244
    %363 = vmatprep.subr.mxu0 0.0
    %364 = vmatpush1.msra.mxu0 %v245
    %365 = vmatprep.subr.mxu0 0.0
    %366 = vmatpush1.msra.mxu0 %v246
    %367 = vmatprep.subr.mxu0 0.0
    %368 = vmatpush1.msra.mxu0 %v247
    %369 = vmatprep.subr.mxu0 0.0
    %370 = vmatpush1.msra.mxu0 %v248
    %371 = vmatprep.subr.mxu0 0.0
    %372 = vmatpush1.msra.mxu0 %v249
    %373 = vmatprep.subr.mxu0 0.0
    %374 = vmatpush1.msra.mxu0 %v250
    %375 = vmatprep.subr.mxu0 0.0
    %376 = vmatpush1.msra.mxu0 %v251
    %377 = vmatprep.subr.mxu0 0.0
    %378 = vmatpush1.msra.mxu0 %v252
    %379 = vmatprep.subr.mxu0 0.0
    %380 = vmatpush1.msra.mxu0 %v253
    %381 = vmatprep.subr.mxu0 0.0
    %382 = vmatpush1.msra.mxu0 %v254
    %383 = vmatprep.subr.mxu0 0.0
    %384 = vmatpush1.msra.mxu0 %v255
    %385 = vmatprep.subr.mxu0 0.0
    %386 = vmatpush1.msra.mxu0 %v256
    %387 = vmatprep.subr.mxu0 0.0
    %388 = vmatpush1.msra.mxu0 %v257
    %389 = vmatprep.subr.mxu0 0.0
    %390 = vmatpush1.msra.mxu0 %v258
    %391 = vmatprep.subr.mxu0 0.0
    %392 = vmatpush1.msra.mxu0 %v259
    %393 = vmatprep.subr.mxu0 0.0
    %394 = vmatpush1.msra.mxu0 %v260
    %395 = vmatprep.mubr.f32.mxu0 %v196
    %396 = vmatmul.mubr.f32.gmra.mrb[0].mxu0 %v194
    %v397 = vpop.f32.mrb[0].mxu0
    %v398 = vadd.f32 %v328, %v397
    %v399 = vpop.f32.mrb[0].mxu0
    %400 = vdwg.mxu0
    %v401 = vmax.f32 %v398, 1e-30
    %v402 = vrcp.pop %v401
    %v403 = vld [vmem:[#allocation5] sm:$0xff]
    %v404 = vld [vmem:[#allocation5 + $0x8] sm:$0xff]
    %v405 = vld [vmem:[#allocation5 + $0x10] sm:$0xff]
    %v406 = vld [vmem:[#allocation5 + $0x18] sm:$0xff]
    %v407 = vld [vmem:[#allocation5 + $0x20] sm:$0xff]
    %v408 = vld [vmem:[#allocation5 + $0x28] sm:$0xff]
    %v409 = vld [vmem:[#allocation5 + $0x30] sm:$0xff]
    %v410 = vld [vmem:[#allocation5 + $0x38] sm:$0xff]
    %v411 = vld [vmem:[#allocation5 + $0x40] sm:$0xff]
    %v412 = vld [vmem:[#allocation5 + $0x48] sm:$0xff]
    %v413 = vld [vmem:[#allocation5 + $0x50] sm:$0xff]
    %v414 = vld [vmem:[#allocation5 + $0x58] sm:$0xff]
    %v415 = vld [vmem:[#allocation5 + $0x60] sm:$0xff]
    %v416 = vld [vmem:[#allocation5 + $0x68] sm:$0xff]
    %v417 = vld [vmem:[#allocation5 + $0x70] sm:$0xff]
    %v418 = vld [vmem:[#allocation5 + $0x78] sm:$0xff]
    %v419 = vld [vmem:[#allocation5 + $0x80] sm:$0xff]
    %v420 = vld [vmem:[#allocation5 + $0x88] sm:$0xff]
    %v421 = vld [vmem:[#allocation5 + $0x90] sm:$0xff]
    %v422 = vld [vmem:[#allocation5 + $0x98] sm:$0xff]
    %v423 = vld [vmem:[#allocation5 + $0xa0] sm:$0xff]
    %v424 = vld [vmem:[#allocation5 + $0xa8] sm:$0xff]
    %v425 = vld [vmem:[#allocation5 + $0xb0] sm:$0xff]
    %v426 = vld [vmem:[#allocation5 + $0xb8] sm:$0xff]
    %v427 = vld [vmem:[#allocation5 + $0xc0] sm:$0xff]
    %v428 = vld [vmem:[#allocation5 + $0xc8] sm:$0xff]
    %v429 = vld [vmem:[#allocation5 + $0xd0] sm:$0xff]
    %v430 = vld [vmem:[#allocation5 + $0xd8] sm:$0xff]
    %v431 = vld [vmem:[#allocation5 + $0xe0] sm:$0xff]
    %v432 = vld [vmem:[#allocation5 + $0xe8] sm:$0xff]
    %v433 = vld [vmem:[#allocation5 + $0xf0] sm:$0xff]
    %v434 = vld [vmem:[#allocation5 + $0xf8] sm:$0xff]
    %v435 = vld [vmem:[#allocation5 + $0x100] sm:$0xff]
    %v436 = vld [vmem:[#allocation5 + $0x108] sm:$0xff]
    %v437 = vld [vmem:[#allocation5 + $0x110] sm:$0xff]
    %v438 = vld [vmem:[#allocation5 + $0x118] sm:$0xff]
    %v439 = vld [vmem:[#allocation5 + $0x120] sm:$0xff]
    %v440 = vld [vmem:[#allocation5 + $0x128] sm:$0xff]
    %v441 = vld [vmem:[#allocation5 + $0x130] sm:$0xff]
    %v442 = vld [vmem:[#allocation5 + $0x138] sm:$0xff]
    %v443 = vld [vmem:[#allocation5 + $0x140] sm:$0xff]
    %v444 = vld [vmem:[#allocation5 + $0x148] sm:$0xff]
    %v445 = vld [vmem:[#allocation5 + $0x150] sm:$0xff]
    %v446 = vld [vmem:[#allocation5 + $0x158] sm:$0xff]
    %v447 = vld [vmem:[#allocation5 + $0x160] sm:$0xff]
    %v448 = vld [vmem:[#allocation5 + $0x168] sm:$0xff]
    %v449 = vld [vmem:[#allocation5 + $0x170] sm:$0xff]
    %v450 = vld [vmem:[#allocation5 + $0x178] sm:$0xff]
    %v451 = vld [vmem:[#allocation5 + $0x180] sm:$0xff]
    %v452 = vld [vmem:[#allocation5 + $0x188] sm:$0xff]
    %v453 = vld [vmem:[#allocation5 + $0x190] sm:$0xff]
    %v454 = vld [vmem:[#allocation5 + $0x198] sm:$0xff]
    %v455 = vld [vmem:[#allocation5 + $0x1a0] sm:$0xff]
    %v456 = vld [vmem:[#allocation5 + $0x1a8] sm:$0xff]
    %v457 = vld [vmem:[#allocation5 + $0x1b0] sm:$0xff]
    %v458 = vld [vmem:[#allocation5 + $0x1b8] sm:$0xff]
    %v459 = vld [vmem:[#allocation5 + $0x1c0] sm:$0xff]
    %v460 = vld [vmem:[#allocation5 + $0x1c8] sm:$0xff]
    %v461 = vld [vmem:[#allocation5 + $0x1d0] sm:$0xff]
    %v462 = vld [vmem:[#allocation5 + $0x1d8] sm:$0xff]
    %v463 = vld [vmem:[#allocation5 + $0x1e0] sm:$0xff]
    %v464 = vld [vmem:[#allocation5 + $0x1e8] sm:$0xff]
    %v465 = vld [vmem:[#allocation5 + $0x1f0] sm:$0xff]
    %v466 = vld [vmem:[#allocation5 + $0x1f8] sm:$0xff]
    %467 = vmatprep.subr.mxu0 %v404
    %468 = vmatpush1.msra.mxu0 %v403
    %469 = vmatprep.subr.mxu0 %v408
    %470 = vmatpush1.msra.mxu0 %v407
    %471 = vmatprep.subr.mxu0 %v412
    %472 = vmatpush1.msra.mxu0 %v411
    %473 = vmatprep.subr.mxu0 %v416
    %474 = vmatpush1.msra.mxu0 %v415
    %475 = vmatprep.subr.mxu0 %v420
    %476 = vmatpush1.msra.mxu0 %v419
    %477 = vmatprep.subr.mxu0 %v424
    %478 = vmatpush1.msra.mxu0 %v423
    %479 = vmatprep.subr.mxu0 %v428
    %480 = vmatpush1.msra.mxu0 %v427
    %481 = vmatprep.subr.mxu0 %v432
    %482 = vmatpush1.msra.mxu0 %v431
    %483 = vmatprep.subr.mxu0 %v436
    %484 = vmatpush1.msra.mxu0 %v435
    %485 = vmatprep.subr.mxu0 %v440
    %486 = vmatpush1.msra.mxu0 %v439
    %487 = vmatprep.subr.mxu0 %v444
    %488 = vmatpush1.msra.mxu0 %v443
    %489 = vmatprep.subr.mxu0 %v448
    %490 = vmatpush1.msra.mxu0 %v447
    %491 = vmatprep.subr.mxu0 %v452
    %492 = vmatpush1.msra.mxu0 %v451
    %493 = vmatprep.subr.mxu0 %v456
    %494 = vmatpush1.msra.mxu0 %v455
    %495 = vmatprep.subr.mxu0 %v460
    %496 = vmatpush1.msra.mxu0 %v459
    %497 = vmatprep.subr.mxu0 %v464
    %498 = vmatpush1.msra.mxu0 %v463
    %499 = vmatprep.subr.mxu0 0.0
    %500 = vmatpush1.msra.mxu0 0.0
    %501 = vmatprep.subr.mxu0 0.0
    %502 = vmatpush1.msra.mxu0 0.0
    %503 = vmatprep.subr.mxu0 0.0
    %504 = vmatpush1.msra.mxu0 0.0
    %505 = vmatprep.subr.mxu0 0.0
    %506 = vmatpush1.msra.mxu0 0.0
    %507 = vmatprep.subr.mxu0 0.0
    %508 = vmatpush1.msra.mxu0 0.0
    %509 = vmatprep.subr.mxu0 0.0
    %510 = vmatpush1.msra.mxu0 0.0
    %511 = vmatprep.subr.mxu0 0.0
    %512 = vmatpush1.msra.mxu0 0.0
    %513 = vmatprep.subr.mxu0 0.0
    %514 = vmatpush1.msra.mxu0 0.0
    %515 = vmatprep.subr.mxu0 0.0
    %516 = vmatpush1.msra.mxu0 0.0
    %517 = vmatprep.subr.mxu0 0.0
    %518 = vmatpush1.msra.mxu0 0.0
    %519 = vmatprep.subr.mxu0 0.0
    %520 = vmatpush1.msra.mxu0 0.0
    %521 = vmatprep.subr.mxu0 0.0
    %522 = vmatpush1.msra.mxu0 0.0
    %523 = vmatprep.subr.mxu0 0.0
    %524 = vmatpush1.msra.mxu0 0.0
    %525 = vmatprep.subr.mxu0 0.0
    %526 = vmatpush1.msra.mxu0 0.0
    %527 = vmatprep.subr.mxu0 0.0
    %528 = vmatpush1.msra.mxu0 0.0
    %529 = vmatprep.subr.mxu0 0.0
    %530 = vmatpush1.msra.mxu0 0.0
    %531 = vmatprep.mubr.f32.mxu0 0.0
    %532 = vmatmul.mubr.f32.gmra.mrb[0].mxu0 %v402
    %v533 = vpop.f32.mrb[0].mxu0
    %v534 = vadd.f32 0.0, %v533
    %v535 = vpop.f32.mrb[0].mxu0
    %v536 = vadd.f32 0.0, %v535
    %537 = vdwg.mxu0
    %538 = vmatprep.subr.mxu0 %v406
    %539 = vmatpush1.msra.mxu0 %v405
    %540 = vmatprep.subr.mxu0 %v410
    %541 = vmatpush1.msra.mxu0 %v409
    %542 = vmatprep.subr.mxu0 %v414
    %543 = vmatpush1.msra.mxu0 %v413
    %544 = vmatprep.subr.mxu0 %v418
    %545 = vmatpush1.msra.mxu0 %v417
    %546 = vmatprep.subr.mxu0 %v422
    %547 = vmatpush1.msra.mxu0 %v421
    %548 = vmatprep.subr.mxu0 %v426
    %549 = vmatpush1.msra.mxu0 %v425
    %550 = vmatprep.subr.mxu0 %v430
    %551 = vmatpush1.msra.mxu0 %v429
    %552 = vmatprep.subr.mxu0 %v434
    %553 = vmatpush1.msra.mxu0 %v433
    %554 = vmatprep.subr.mxu0 %v438
    %555 = vmatpush1.msra.mxu0 %v437
    %556 = vmatprep.subr.mxu0 %v442
    %557 = vmatpush1.msra.mxu0 %v441
    %558 = vmatprep.subr.mxu0 %v446
    %559 = vmatpush1.msra.mxu0 %v445
    %560 = vmatprep.subr.mxu0 %v450
    %561 = vmatpush1.msra.mxu0 %v449
    %562 = vmatprep.subr.mxu0 %v454
    %563 = vmatpush1.msra.mxu0 %v453
    %564 = vmatprep.subr.mxu0 %v458
    %565 = vmatpush1.msra.mxu0 %v457
    %566 = vmatprep.subr.mxu0 %v462
    %567 = vmatpush1.msra.mxu0 %v461
    %568 = vmatprep.subr.mxu0 %v466
    %569 = vmatpush1.msra.mxu0 %v465
    %570 = vmatprep.subr.mxu0 0.0
    %571 = vmatpush1.msra.mxu0 0.0
    %572 = vmatprep.subr.mxu0 0.0
    %573 = vmatpush1.msra.mxu0 0.0
    %574 = vmatprep.subr.mxu0 0.0
    %575 = vmatpush1.msra.mxu0 0.0
    %576 = vmatprep.subr.mxu0 0.0
    %577 = vmatpush1.msra.mxu0 0.0
    %578 = vmatprep.subr.mxu0 0.0
    %579 = vmatpush1.msra.mxu0 0.0
    %580 = vmatprep.subr.mxu0 0.0
    %581 = vmatpush1.msra.mxu0 0.0
    %582 = vmatprep.subr.mxu0 0.0
    %583 = vmatpush1.msra.mxu0 0.0
    %584 = vmatprep.subr.mxu0 0.0
    %585 = vmatpush1.msra.mxu0 0.0
    %586 = vmatprep.subr.mxu0 0.0
    %587 = vmatpush1.msra.mxu0 0.0
    %588 = vmatprep.subr.mxu0 0.0
    %589 = vmatpush1.msra.mxu0 0.0
    %590 = vmatprep.subr.mxu0 0.0
    %591 = vmatpush1.msra.mxu0 0.0
    %592 = vmatprep.subr.mxu0 0.0
    %593 = vmatpush1.msra.mxu0 0.0
    %594 = vmatprep.subr.mxu0 0.0
    %595 = vmatpush1.msra.mxu0 0.0
    %596 = vmatprep.subr.mxu0 0.0
    %597 = vmatpush1.msra.mxu0 0.0
    %598 = vmatprep.subr.mxu0 0.0
    %599 = vmatpush1.msra.mxu0 0.0
    %600 = vmatprep.subr.mxu0 0.0
    %601 = vmatpush1.msra.mxu0 0.0
    %602 = vmatprep.mubr.f32.mxu0 0.0
    %603 = vmatmul.mubr.f32.gmra.mrb[0].mxu0 %v402
    %v604 = vpop.f32.mrb[0].mxu0
    %v605 = vadd.f32 0.0, %v604
    %v606 = vpop.f32.mrb[0].mxu0
    %v607 = vadd.f32 0.0, %v606
    %608 = vdwg.mxu0
    %v609 = vmul.f32 %v190, %v534
    %v610 = vmul.f32 %v192, %v536
    %v611 = vmul.f32 %v194, %v605
    %v612 = vmul.f32 %v196, %v607
    %v613 = vadd.f32 %v609, %v610
    %v614 = vadd.f32 %v613, %v611
    %v615 = vadd.f32 %v614, %v612
    %v616 = vld [vmem:[#allocation7] sm:$0xff]
    %v617 = vld [vmem:[#allocation7 + $0x8] sm:$0xff]
    %v618 = vld [vmem:[#allocation7 + $0x10] sm:$0xff]
    %v619 = vld [vmem:[#allocation7 + $0x18] sm:$0xff]
    %v620 = vld [vmem:[#allocation7 + $0x20] sm:$0xff]
    %v621 = vld [vmem:[#allocation7 + $0x28] sm:$0xff]
    %v622 = vld [vmem:[#allocation7 + $0x30] sm:$0xff]
    %v623 = vld [vmem:[#allocation7 + $0x38] sm:$0xff]
    %v624 = vld [vmem:[#allocation7 + $0x40] sm:$0xff]
    %v625 = vld [vmem:[#allocation7 + $0x48] sm:$0xff]
    %v626 = vld [vmem:[#allocation7 + $0x50] sm:$0xff]
    %v627 = vld [vmem:[#allocation7 + $0x58] sm:$0xff]
    %v628 = vld [vmem:[#allocation7 + $0x60] sm:$0xff]
    %v629 = vld [vmem:[#allocation7 + $0x68] sm:$0xff]
    %v630 = vld [vmem:[#allocation7 + $0x70] sm:$0xff]
    %v631 = vld [vmem:[#allocation7 + $0x78] sm:$0xff]
    %632 = vmatprep.subr.mxu0 0.0
    %633 = vmatpush1.msra.mxu0 %v616
    %634 = vmatprep.subr.mxu0 0.0
    %635 = vmatpush1.msra.mxu0 %v617
    %636 = vmatprep.subr.mxu0 0.0
    %637 = vmatpush1.msra.mxu0 %v618
    %638 = vmatprep.subr.mxu0 0.0
    %639 = vmatpush1.msra.mxu0 %v619
    %640 = vmatprep.subr.mxu0 0.0
    %641 = vmatpush1.msra.mxu0 %v620
    %642 = vmatprep.subr.mxu0 0.0
    %643 = vmatpush1.msra.mxu0 %v621
    %644 = vmatprep.subr.mxu0 0.0
    %645 = vmatpush1.msra.mxu0 %v622
    %646 = vmatprep.subr.mxu0 0.0
    %647 = vmatpush1.msra.mxu0 %v623
    %648 = vmatprep.subr.mxu0 0.0
    %649 = vmatpush1.msra.mxu0 %v624
    %650 = vmatprep.subr.mxu0 0.0
    %651 = vmatpush1.msra.mxu0 %v625
    %652 = vmatprep.subr.mxu0 0.0
    %653 = vmatpush1.msra.mxu0 %v626
    %654 = vmatprep.subr.mxu0 0.0
    %655 = vmatpush1.msra.mxu0 %v627
    %656 = vmatprep.subr.mxu0 0.0
    %657 = vmatpush1.msra.mxu0 %v628
    %658 = vmatprep.subr.mxu0 0.0
    %659 = vmatpush1.msra.mxu0 %v629
    %660 = vmatprep.subr.mxu0 0.0
    %661 = vmatpush1.msra.mxu0 %v630
    %662 = vmatprep.subr.mxu0 0.0
    %663 = vmatpush1.msra.mxu0 %v631
    %664 = vmatprep.subr.mxu0 0.0
    %665 = vmatpush1.msra.mxu0 0.0
    %666 = vmatprep.subr.mxu0 0.0
    %667 = vmatpush1.msra.mxu0 0.0
    %668 = vmatprep.subr.mxu0 0.0
    %669 = vmatpush1.msra.mxu0 0.0
    %670 = vmatprep.subr.mxu0 0.0
    %671 = vmatpush1.msra.mxu0 0.0
    %672 = vmatprep.subr.mxu0 0.0
    %673 = vmatpush1.msra.mxu0 0.0
    %674 = vmatprep.subr.mxu0 0.0
    %675 = vmatpush1.msra.mxu0 0.0
    %676 = vmatprep.subr.mxu0 0.0
    %677 = vmatpush1.msra.mxu0 0.0
    %678 = vmatprep.subr.mxu0 0.0
    %679 = vmatpush1.msra.mxu0 0.0
    %680 = vmatprep.subr.mxu0 0.0
    %681 = vmatpush1.msra.mxu0 0.0
    %682 = vmatprep.subr.mxu0 0.0
    %683 = vmatpush1.msra.mxu0 0.0
    %684 = vmatprep.subr.mxu0 0.0
    %685 = vmatpush1.msra.mxu0 0.0
    %686 = vmatprep.subr.mxu0 0.0
    %687 = vmatpush1.msra.mxu0 0.0
    %688 = vmatprep.subr.mxu0 0.0
    %689 = vmatpush1.msra.mxu0 0.0
    %690 = vmatprep.subr.mxu0 0.0
    %691 = vmatpush1.msra.mxu0 0.0
    %692 = vmatprep.subr.mxu0 0.0
    %693 = vmatpush1.msra.mxu0 0.0
    %694 = vmatprep.subr.mxu0 0.0
    %695 = vmatpush1.msra.mxu0 0.0
    %696 = vmatprep.mubr.f32.mxu0 0.0
    %697 = vmatmul.mubr.f32.gmra.mrb[0].mxu0 %v615
    %v698 = vpop.f32.mrb[0].mxu0
    %v699 = vadd.f32 0.0, %v698
    %v700 = vpop.f32.mrb[0].mxu0
    %701 = vdwg.mxu0
    %v702 = vadd.f32 %v179, %v699
    %703 = vmax.xlane.f32.xlu0 %v702
    %v704 = vpop.xlane.xlu0 %703
    %v705 = vsub.f32 %v702, %v704
    %v706 = vmul.f32 %v705, 1.442695
    %v707 = vpow.pop %v706
    %708 = vadd.xlane.f32.xlu0 %v707
    %v709 = vpop.xlane.xlu0 %708
    %v710 = vrcp.pop %v709
    %v711 = vmul.f32 %v707, %v710
    %712 = vmatprep.subr.mxu0 %v404
    %713 = vmatpush1.msra.mxu0 %v403
    %714 = vmatprep.subr.mxu0 %v408
    %715 = vmatpush1.msra.mxu0 %v407
    %716 = vmatprep.subr.mxu0 %v412
    %717 = vmatpush1.msra.mxu0 %v411
    %718 = vmatprep.subr.mxu0 %v416
    %719 = vmatpush1.msra.mxu0 %v415
    %720 = vmatprep.subr.mxu0 %v420
    %721 = vmatpush1.msra.mxu0 %v419
    %722 = vmatprep.subr.mxu0 %v424
    %723 = vmatpush1.msra.mxu0 %v423
    %724 = vmatprep.subr.mxu0 %v428
    %725 = vmatpush1.msra.mxu0 %v427
    %726 = vmatprep.subr.mxu0 %v432
    %727 = vmatpush1.msra.mxu0 %v431
    %728 = vmatprep.subr.mxu0 %v436
    %729 = vmatpush1.msra.mxu0 %v435
    %730 = vmatprep.subr.mxu0 %v440
    %731 = vmatpush1.msra.mxu0 %v439
    %732 = vmatprep.subr.mxu0 %v444
    %733 = vmatpush1.msra.mxu0 %v443
    %734 = vmatprep.subr.mxu0 %v448
    %735 = vmatpush1.msra.mxu0 %v447
    %736 = vmatprep.subr.mxu0 %v452
    %737 = vmatpush1.msra.mxu0 %v451
    %738 = vmatprep.subr.mxu0 %v456
    %739 = vmatpush1.msra.mxu0 %v455
    %740 = vmatprep.subr.mxu0 %v460
    %741 = vmatpush1.msra.mxu0 %v459
    %742 = vmatprep.subr.mxu0 %v464
    %743 = vmatpush1.msra.mxu0 %v463
    %744 = vmatprep.subr.mxu0 0.0
    %745 = vmatpush1.msra.mxu0 0.0
    %746 = vmatprep.subr.mxu0 0.0
    %747 = vmatpush1.msra.mxu0 0.0
    %748 = vmatprep.subr.mxu0 0.0
    %749 = vmatpush1.msra.mxu0 0.0
    %750 = vmatprep.subr.mxu0 0.0
    %751 = vmatpush1.msra.mxu0 0.0
    %752 = vmatprep.subr.mxu0 0.0
    %753 = vmatpush1.msra.mxu0 0.0
    %754 = vmatprep.subr.mxu0 0.0
    %755 = vmatpush1.msra.mxu0 0.0
    %756 = vmatprep.subr.mxu0 0.0
    %757 = vmatpush1.msra.mxu0 0.0
    %758 = vmatprep.subr.mxu0 0.0
    %759 = vmatpush1.msra.mxu0 0.0
    %760 = vmatprep.subr.mxu0 0.0
    %761 = vmatpush1.msra.mxu0 0.0
    %762 = vmatprep.subr.mxu0 0.0
    %763 = vmatpush1.msra.mxu0 0.0
    %764 = vmatprep.subr.mxu0 0.0
    %765 = vmatpush1.msra.mxu0 0.0
    %766 = vmatprep.subr.mxu0 0.0
    %767 = vmatpush1.msra.mxu0 0.0
    %768 = vmatprep.subr.mxu0 0.0
    %769 = vmatpush1.msra.mxu0 0.0
    %770 = vmatprep.subr.mxu0 0.0
    %771 = vmatpush1.msra.mxu0 0.0
    %772 = vmatprep.subr.mxu0 0.0
    %773 = vmatpush1.msra.mxu0 0.0
    %774 = vmatprep.subr.mxu0 0.0
    %775 = vmatpush1.msra.mxu0 0.0
    %776 = vmatprep.mubr.f32.mxu0 0.0
    %777 = vmatmul.mubr.f32.gmra.mrb[0].mxu0 %v711
    %v778 = vpop.f32.mrb[0].mxu0
    %v779 = vadd.f32 0.0, %v778
    %v780 = vpop.f32.mrb[0].mxu0
    %v781 = vadd.f32 0.0, %v780
    %782 = vdwg.mxu0
    %783 = vmatprep.subr.mxu0 %v406
    %784 = vmatpush1.msra.mxu0 %v405
    %785 = vmatprep.subr.mxu0 %v410
    %786 = vmatpush1.msra.mxu0 %v409
    %787 = vmatprep.subr.mxu0 %v414
    %788 = vmatpush1.msra.mxu0 %v413
    %789 = vmatprep.subr.mxu0 %v418
    %790 = vmatpush1.msra.mxu0 %v417
    %791 = vmatprep.subr.mxu0 %v422
    %792 = vmatpush1.msra.mxu0 %v421
    %793 = vmatprep.subr.mxu0 %v426
    %794 = vmatpush1.msra.mxu0 %v425
    %795 = vmatprep.subr.mxu0 %v430
    %796 = vmatpush1.msra.mxu0 %v429
    %797 = vmatprep.subr.mxu0 %v434
    %798 = vmatpush1.msra.mxu0 %v433
    %799 = vmatprep.subr.mxu0 %v438
    %800 = vmatpush1.msra.mxu0 %v437
    %801 = vmatprep.subr.mxu0 %v442
    %802 = vmatpush1.msra.mxu0 %v441
    %803 = vmatprep.subr.mxu0 %v446
    %804 = vmatpush1.msra.mxu0 %v445
    %805 = vmatprep.subr.mxu0 %v450
    %806 = vmatpush1.msra.mxu0 %v449
    %807 = vmatprep.subr.mxu0 %v454
    %808 = vmatpush1.msra.mxu0 %v453
    %809 = vmatprep.subr.mxu0 %v458
    %810 = vmatpush1.msra.mxu0 %v457
    %811 = vmatprep.subr.mxu0 %v462
    %812 = vmatpush1.msra.mxu0 %v461
    %813 = vmatprep.subr.mxu0 %v466
    %814 = vmatpush1.msra.mxu0 %v465
    %815 = vmatprep.subr.mxu0 0.0
    %816 = vmatpush1.msra.mxu0 0.0
    %817 = vmatprep.subr.mxu0 0.0
    %818 = vmatpush1.msra.mxu0 0.0
    %819 = vmatprep.subr.mxu0 0.0
    %820 = vmatpush1.msra.mxu0 0.0
    %821 = vmatprep.subr.mxu0 0.0
    %822 = vmatpush1.msra.mxu0 0.0
    %823 = vmatprep.subr.mxu0 0.0
    %824 = vmatpush1.msra.mxu0 0.0
    %825 = vmatprep.subr.mxu0 0.0
    %826 = vmatpush1.msra.mxu0 0.0
    %827 = vmatprep.subr.mxu0 0.0
    %828 = vmatpush1.msra.mxu0 0.0
    %829 = vmatprep.subr.mxu0 0.0
    %830 = vmatpush1.msra.mxu0 0.0
    %831 = vmatprep.subr.mxu0 0.0
    %832 = vmatpush1.msra.mxu0 0.0
    %833 = vmatprep.subr.mxu0 0.0
    %834 = vmatpush1.msra.mxu0 0.0
    %835 = vmatprep.subr.mxu0 0.0
    %836 = vmatpush1.msra.mxu0 0.0
    %837 = vmatprep.subr.mxu0 0.0
    %838 = vmatpush1.msra.mxu0 0.0
    %839 = vmatprep.subr.mxu0 0.0
    %840 = vmatpush1.msra.mxu0 0.0
    %841 = vmatprep.subr.mxu0 0.0
    %842 = vmatpush1.msra.mxu0 0.0
    %843 = vmatprep.subr.mxu0 0.0
    %844 = vmatpush1.msra.mxu0 0.0
    %845 = vmatprep.subr.mxu0 0.0
    %846 = vmatpush1.msra.mxu0 0.0
    %847 = vmatprep.mubr.f32.mxu0 0.0
    %848 = vmatmul.mubr.f32.gmra.mrb[0].mxu0 %v711
    %v849 = vpop.f32.mrb[0].mxu0
    %v850 = vadd.f32 0.0, %v849
    %v851 = vpop.f32.mrb[0].mxu0
    %v852 = vadd.f32 0.0, %v851
    %853 = vdwg.mxu0
    %v854 = vmul.f32 %v609, %v779
    %v855 = vmul.f32 %v610, %v781
    %v856 = vmul.f32 %v611, %v850
    %v857 = vmul.f32 %v612, %v852
    %v858 = vadd.f32 %v854, %v855
    %v859 = vadd.f32 %v858, %v856
    %v860 = vadd.f32 %v859, %v857
    %861 = vst [vmem:[#allocation8] sm:$0xff] %v860
    %862 = vst [vmem:[#allocation9] sm:$0xff] %v711
    // Predicated region
    $region38: #{tpu_custom_call.1} parent=1 // pred_check
      _
    $region39: #{tpu_custom_call.1} parent=1 // pred_check_branch
      %864 = sbr.rel (0) target = $region41
    $region40: #{tpu_custom_call.1} parent=1 // pred_region
      %s866 = ssub.s32 128, 128
      %867 = vsyncadd [#allocation4], %s866
      %s869 = sshll.u32 [#allocation8], 4
      %s870 = int_to_ptr.vmem [resolvable:$true] %s869
      %872 = dma.vmem_to_hbm [thread:$0]  %s870, 128, %s6, [#allocation4]
    $region41: #{tpu_custom_call.1} parent=1 // pred_fallthru
      _
    // Predicated region
    $region42: #{tpu_custom_call.1} parent=1 // pred_check
      _
    $region43: #{tpu_custom_call.1} parent=1 // pred_check_branch
      %874 = sbr.rel (0) target = $region45
    $region44: #{tpu_custom_call.1} parent=1 // pred_region
      %s876 = ssub.s32 128, 128
      %877 = vsyncadd [#allocation10], %s876
      %s879 = sshll.u32 [#allocation9], 4
      %s880 = int_to_ptr.vmem [resolvable:$true] %s879
      %882 = dma.vmem_to_hbm [thread:$0]  %s880, 128, %s7, [#allocation10]
    $region45: #{tpu_custom_call.1} parent=1 // pred_fallthru
      _
    // Predicated region
    $region46: #{tpu_custom_call.1} parent=1 // pred_check
      _
    $region47: #{tpu_custom_call.1} parent=1 // pred_check_branch
      %884 = sbr.rel (0) target = $region49
    $region48: #{tpu_custom_call.1} parent=1 // pred_region
      %885 = dma.done [#allocation4], 128
    $region49: #{tpu_custom_call.1} parent=1 // pred_fallthru
      _
    // Predicated region
    $region50: #{tpu_custom_call.1} parent=1 // pred_check
      _
    $region51: #{tpu_custom_call.1} parent=1 // pred_check_branch
      %887 = sbr.rel (0) target = $region53
    $region52: #{tpu_custom_call.1} parent=1 // pred_region
      %888 = dma.done [#allocation10], 128
    $region53: #{tpu_custom_call.1} parent=1 // pred_fallthru
      _
    %889 = vsyncpa [#allocation3], 1
    %890 = vsyncpa [#allocation6], 1
    %891 = vsyncpa [#allocation4], 1
    %892 = vsyncpa [#allocation10], 1

</llo_original>
